<compile_context>
chip_gen: v7x
topology: tpu7x:2x2x1
jax: 0.10.0
libtpu: 0.0.40
codegen_flags: <defaults>
</compile_context>

<pallas_src>
import numpy as np

import jax
import jax.numpy as jnp
from jax.experimental import pallas as pl
from jax.experimental.pallas import tpu as pltpu


def _round_up(x, m):
    return ((x + m - 1) // m) * m


# ---------------------------------------------------------------------------
# One-time capability probe for BlockSpec(pipeline_mode=pl.Buffered(...)).
# (Replaces the old try/except around the real kernel execution.)
# ---------------------------------------------------------------------------
_BUFFERED_SUPPORTED = None


def _probe_pipeline_mode():
    if not hasattr(pl, "Buffered"):
        return False

    def _k(x_ref, b_ref, o_ref):
        o_ref[...] = x_ref[...] + b_ref[...]

    try:
        x = jnp.zeros((32, 128), jnp.float32)
        b = jnp.zeros((1, 128), jnp.float32)
        out = pl.pallas_call(
            _k,
            out_shape=jax.ShapeDtypeStruct((32, 128), jnp.float32),
            grid=(4,),
            in_specs=[pl.BlockSpec((8, 128), lambda i: (i, 0),
                                   pipeline_mode=pl.Buffered(3)),
                      pl.BlockSpec((1, 128), lambda i: (0, 0),
                                   pipeline_mode=pl.Buffered(1))],
            out_specs=pl.BlockSpec((8, 128), lambda i: (i, 0)),
        )(x, b)
        jax.block_until_ready(out)
        return True
    except Exception:
        return False


def _buffered_supported():
    global _BUFFERED_SUPPORTED
    if _BUFFERED_SUPPORTED is None:
        _BUFFERED_SUPPORTED = _probe_pipeline_mode()
    return _BUFFERED_SUPPORTED


def _vmem_budget_bytes():
    """Usable scoped-VMEM budget for this TPU generation (with headroom)."""
    cap = None
    try:
        info = pltpu.get_tpu_info()
        cap = int(getattr(info, "vmem_capacity_bytes", 0)) or None
    except Exception:
        cap = None
    if cap is None:
        cap = 64 << 20                                  # conservative default
    if cap <= (64 << 20):                               # v7x-class part
        return max(cap - (12 << 20), 24 << 20)          # leave Mosaic headroom
    return max(cap - (28 << 20), 64 << 20)              # v5e/v6e: ~100 MiB


# ---------------------------------------------------------------------------
# Kernels.  Grid = (batch_tiles, n_tiles, k_tiles); K (reduction) axis last.
# ---------------------------------------------------------------------------
def _linear_kernel_inplace(x_ref, wt_ref, b_ref, o_ref):
    # f32 output block is VMEM-resident across K (index (i, j) constant in k):
    # accumulate directly into it — no scratch, no epilogue copy.
    k = pl.program_id(2)

    @pl.when(k == 0)
    def _():
        o_ref[...] = jnp.zeros_like(o_ref)

    o_ref[...] += jnp.dot(x_ref[...], wt_ref[...],
                          preferred_element_type=jnp.float32)

    @pl.when(k == pl.num_programs(2) - 1)
    def _():
        o_ref[...] += b_ref[...]


def _linear_kernel_acc(x_ref, wt_ref, b_ref, o_ref, acc_ref):
    # Narrow output dtype (e.g. bf16): keep an f32 accumulator, cast once.
    k = pl.program_id(2)

    @pl.when(k == 0)
    def _():
        acc_ref[...] = jnp.zeros_like(acc_ref)

    acc_ref[...] += jnp.dot(x_ref[...], wt_ref[...],
                            preferred_element_type=jnp.float32)

    @pl.when(k == pl.num_programs(2) - 1)
    def _():
        o_ref[...] = (acc_ref[...] + b_ref[...]).astype(o_ref.dtype)


def _linear_pallas(x_p, wt_p, b_p, *, block_b, block_n, block_k, out_dtype,
                   vmem_budget, use_buffered, flops, bytes_accessed):
    """x_p: (Bp, Kp), wt_p: (Kp, Np), b_p: (1, Np) -> (Bp, Np) in out_dtype."""
    Bp, Kp = x_p.shape
    Kp2, Np = wt_p.shape
    assert Kp == Kp2
    assert Bp % block_b == 0 and Np % block_n == 0 and Kp % block_k == 0
    num_b, num_n, num_k = Bp // block_b, Np // block_n, Kp // block_k
    grid = (num_b, num_n, num_k)

    out_dtype = np.dtype(out_dtype)
    use_scratch = out_dtype != np.dtype(jnp.float32)
    kernel = _linear_kernel_acc if use_scratch else _linear_kernel_inplace
    scratch = ([pltpu.VMEM((block_b, block_n), jnp.float32)]
               if use_scratch else [])

    in_itemsize = x_p.dtype.itemsize
    out_itemsize = out_dtype.itemsize

    # Grid-constant blocks can be single-buffered (halves their VMEM use).
    w_bufs = 1 if (use_buffered and num_k == 1 and num_n == 1) else 2
    b_bufs = 1 if (use_buffered and num_n == 1) else 2

    def vmem_needed(x_bufs):
        return (x_bufs * block_b * block_k * in_itemsize
                + w_bufs * block_k * block_n * in_itemsize
                + b_bufs * block_n * 4
                + 2 * block_b * block_n * out_itemsize
                + (block_b * block_n * 4 if use_scratch else 0))

    # Deeper x pipeline when K is untiled (hides DMA-issue latency / per-step
    # overhead on fast-HBM parts) — only if the extra buffer fits the budget.
    x_bufs = 2
    if (use_buffered and num_k == 1 and num_n == 1 and num_b >= 3
            and vmem_needed(3) + (4 << 20) <= vmem_budget):
        x_bufs = 3

    needed = vmem_needed(x_bufs)
    vmem_limit = int(min(max(needed + needed // 4 + (4 << 20), 32 << 20),
                         vmem_budget))

    def spec(shape, imap, bufs):
        if use_buffered and bufs != 2:
            return pl.BlockSpec(shape, imap, pipeline_mode=pl.Buffered(bufs))
        return pl.BlockSpec(shape, imap)

    x_spec = spec((block_b, block_k), lambda i, j, k: (i, k), x_bufs)
    w_spec = spec((block_k, block_n), lambda i, j, k: (k, j), w_bufs)
    b_spec = spec((1, block_n), lambda i, j, k: (0, j), b_bufs)
    o_spec = pl.BlockSpec((block_b, block_n), lambda i, j, k: (i, j))

    return pl.pallas_call(
        kernel,
        out_shape=jax.ShapeDtypeStruct((Bp, Np), out_dtype),
        grid_spec=pltpu.PrefetchScalarGridSpec(
            num_scalar_prefetch=0,
            grid=grid,
            in_specs=[x_spec, w_spec, b_spec],
            out_specs=o_spec,
            scratch_shapes=tuple(scratch),
        ),
        compiler_params=pltpu.CompilerParams(
            dimension_semantics=("parallel", "parallel", "arbitrary"),
            vmem_limit_bytes=vmem_limit,
        ),
        cost_estimate=pl.CostEstimate(
            flops=int(flops), transcendentals=0,
            bytes_accessed=int(bytes_accessed)),
    )(x_p, wt_p, b_p)


class LinearRegressionPallas:
    """Pallas-TPU equivalent of the PyTorch `LinearRegression` module.

    Parameters are transposed / zero-padded to lane-dense shapes once at
    construction.  `compute_dtype` defaults to bfloat16 (f32 accumulation);
    pass jnp.float32 to bit-match the PyTorch reference.  The kernel writes
    the output in the caller's dtype (or `out_dtype` if given).
    """

    def __init__(self, weight, bias, *, compute_dtype=jnp.bfloat16,
                 out_dtype=None, block_b=None, block_k=None, block_n=None):
        weight = jnp.asarray(weight)
        bias = jnp.asarray(bias)
        self.N, self.K = weight.shape
        assert bias.shape == (self.N,), "bias shape mismatch"
        self.compute_dtype = compute_dtype
        self.out_dtype = out_dtype
        self._block_b_override = block_b
        self._vmem_budget = _vmem_budget_bytes()
        self._use_buffered = _buffered_supported()      # one-time probe
        itemsize = np.dtype(compute_dtype).itemsize

        # Lane-dense (multiple-of-128) output minor dim; tile N when the
        # per-tile W^T / output slabs would otherwise blow the VMEM budget.
        np_128 = _round_up(self.N, 128)
        if block_n is not None:
            self.block_n = block_n
        elif np_128 <= 4096:
            self.block_n = np_128
        else:
            self.block_n = 1024
        self.Np = _round_up(self.N, self.block_n)

        # Reduction (K) tiling: keep the (double-buffered) W^T slab inside a
        # fraction of the per-generation VMEM budget; untiled when it fits.
        w_slab_budget = min(16 << 20, self._vmem_budget // 4)
        if block_k is not None:
            self.block_k = block_k
        elif 2 * self.K * self.block_n * itemsize <= w_slab_budget:
            self.block_k = self.K            # untiled K
        else:
            bk = (w_slab_budget // (2 * self.block_n * itemsize)) // 128 * 128
            self.block_k = int(max(128, min(2048, bk)))
        self.Kp = self.K if self.block_k == self.K \
            else _round_up(self.K, self.block_k)

        # One-time transpose + pad (hoisted off the forward path).
        wt = jnp.asarray(weight, jnp.float32).T.astype(compute_dtype)  # (K, N)
        if (self.Kp, self.Np) != (self.K, self.N):
            wt = jnp.zeros((self.Kp, self.Np), compute_dtype) \
                    .at[:self.K, :self.N].set(wt)
        self.wt_p = wt
        self.bias_p = jnp.zeros((1, self.Np), jnp.float32) \
                         .at[0, :self.N].set(jnp.asarray(bias, jnp.float32))

        # Largest batch tile whose x/out/acc buffers still fit the budget.
        per_row = 2 * self.block_k * itemsize + 3 * self.block_n * 4
        fixed = 2 * self.block_k * self.block_n * itemsize + (8 << 20)
        max_bb = max((self._vmem_budget - fixed) // per_row, 8)
        self._max_block_b = int(min(1024, (max_bb // 8) * 8))

        # Jit the whole forward path so pad / slice / cast fuse with the call.
        self._jit_forward = jax.jit(self._forward_impl)

    def _choose_block_b(self, B):
        if self._block_b_override is not None:
            return self._block_b_override
        align = 16 if np.dtype(self.compute_dtype).itemsize == 2 else 8
        if B < 64:
            return _round_up(max(B, 1), align)
        # >=4 batch tiles (>=2 per TensorCore on dual-core parts), MXU-aligned
        # when large, capped by the VMEM budget.
        bb = _round_up(-(-B // 4), align)
        if bb >= 256:
            bb = _round_up(bb, 256)
        return int(max(align, min(bb, self._max_block_b)))

    def _forward_impl(self, x, wt_p, bias_p):
        B, K = x.shape
        assert K == self.K, "input_dim mismatch"
        out_dtype = np.dtype(self.out_dtype) if self.out_dtype is not None \
            else np.dtype(x.dtype)
        block_b = self._choose_block_b(B)
        Bp = _round_up(B, block_b)

        xc = x.astype(self.compute_dtype)
        if (Bp, self.Kp) != (B, K):            # skip pad when already aligned
            xc = jnp.zeros((Bp, self.Kp), self.compute_dtype) \
                    .at[:B, :K].set(xc)

        in_is = np.dtype(self.compute_dtype).itemsize
        flops = 2 * B * K * self.N
        bytes_accessed = (B * K * in_is + self.Kp * self.Np * in_is
                          + B * self.N * out_dtype.itemsize + 4 * self.Np)
        out_p = _linear_pallas(
            xc, wt_p, bias_p,
            block_b=block_b, block_n=self.block_n, block_k=self.block_k,
            out_dtype=out_dtype, vmem_budget=self._vmem_budget,
            use_buffered=self._use_buffered,
            flops=flops, bytes_accessed=bytes_accessed)
        if (Bp, self.Np) != (B, self.N):
            out_p = out_p[:B, :self.N]
        return out_p

    def __call__(self, x):
        return self._jit_forward(x, self.wt_p, self.bias_p)


def linear_regression_forward(x, weight, bias, **kwargs):
    # Convenience one-shot wrapper; prefer the class for repeated inference so
    # the transpose/padding stays hoisted out of the forward path.
    return LinearRegressionPallas(weight, bias, **kwargs)(x)


if __name__ == "__main__":
    # --- Test 1: shapes matching the module spec: nn.Linear(32, 16), batch 8.
    B, input_dim, output_dim = 8, 32, 16
    key = jax.random.PRNGKey(0)
    kx, kw, kb = jax.random.split(key, 3)

    x = jax.random.normal(kx, (B, input_dim), dtype=jnp.float32)
    bound = 1.0 / jnp.sqrt(jnp.float32(input_dim))
    weight = jax.random.uniform(kw, (output_dim, input_dim),
                                minval=-bound, maxval=bound, dtype=jnp.float32)
    bias = jax.random.uniform(kb, (output_dim,),
                              minval=-bound, maxval=bound, dtype=jnp.float32)
    ref = x @ weight.T + bias

    # f32 compute: bit-accurate vs the PyTorch reference math.
    model_f32 = LinearRegressionPallas(weight, bias, compute_dtype=jnp.float32)
    out_f32 = jax.block_until_ready(model_f32(x))
    assert out_f32.shape == (B, output_dim) and out_f32.dtype == jnp.float32
    assert jnp.allclose(out_f32, ref, atol=1e-5, rtol=1e-5), "f32 mismatch"

    # Default bf16 compute (f32 accumulation) — the fast path.
    model_bf16 = LinearRegressionPallas(weight, bias)
    out_bf16 = jax.block_until_ready(model_bf16(x))
    assert out_bf16.shape == (B, output_dim)
    assert jnp.allclose(out_bf16, ref, atol=2e-2, rtol=2e-2), "bf16 mismatch"

    # --- Test 2: batch-grid tiling, K-reduction tiling, B/K/N padding (f32).
    B2, K2, N2 = 300, 256, 48
    k2x, k2w, k2b = jax.random.split(jax.random.PRNGKey(1), 3)
    x2 = jax.random.normal(k2x, (B2, K2), dtype=jnp.float32)
    w2 = jax.random.normal(k2w, (N2, K2), dtype=jnp.float32) * 0.05
    b2 = jax.random.normal(k2b, (N2,), dtype=jnp.float32)
    model2 = LinearRegressionPallas(w2, b2, compute_dtype=jnp.float32,
                                    block_k=128)        # force 2 K steps
    out2 = jax.block_until_ready(model2(x2))
    ref2 = x2 @ w2.T + b2
    assert out2.shape == (B2, N2)
    assert jnp.allclose(out2, ref2, atol=1e-4, rtol=1e-4), "tiled-K mismatch"

    # --- Test 3: bf16 in/out (narrow-output scratch path, >=4 batch tiles).
    B3, K3, N3 = 64, 128, 256
    k3x, k3w, k3b = jax.random.split(jax.random.PRNGKey(2), 3)
    x3 = jax.random.normal(k3x, (B3, K3), dtype=jnp.float32)
    w3 = jax.random.normal(k3w, (N3, K3), dtype=jnp.float32) * 0.05
    b3 = jax.random.normal(k3b, (N3,), dtype=jnp.float32)
    model3 = LinearRegressionPallas(w3, b3)              # default bf16
    out3 = jax.block_until_ready(model3(x3.astype(jnp.bfloat16)))
    assert out3.shape == (B3, N3) and out3.dtype == jnp.bfloat16
    ref3 = x3 @ w3.T + b3
    assert jnp.allclose(out3.astype(jnp.float32), ref3, atol=5e-2, rtol=5e-2), \
        "bf16-output mismatch"

    print("KERNEL_OK")
</pallas_src>

<mosaic_0001>
module attributes {stable_mosaic.version = 11 : i64} {
  func.func @_linear_kernel_inplace(%arg0: i32, %arg1: i32, %arg2: i32, %arg3: memref<8x32xf32, #tpu.memory_space<vmem>>, %arg4: memref<32x128xf32, #tpu.memory_space<vmem>>, %arg5: memref<1x128xf32, #tpu.memory_space<vmem>>, %arg6: memref<8x128xf32, #tpu.memory_space<vmem>>) attributes {dimension_semantics = [#tpu.dimension_semantics<parallel>, #tpu.dimension_semantics<parallel>, #tpu.dimension_semantics<arbitrary>], iteration_bounds = array<i64: 1, 1, 1>, scalar_prefetch = 0 : i64, scratch_operands = 0 : i64, tpu.core_type = #tpu.core_type<tc>, window_params = [{transform_indices = @transform_0, window_bounds = array<i64: 8, 32>}, {transform_indices = @transform_1, window_bounds = array<i64: 32, 128>}, {transform_indices = @transform_2, window_bounds = array<i64: 1, 128>}, {transform_indices = @transform_3, window_bounds = array<i64: 8, 128>}]} {
    %c0_i32 = arith.constant 0 : i32
    %0 = arith.cmpi eq, %arg2, %c0_i32 : i32
    %1 = arith.extui %0 : i1 to i32
    %c0_i32_0 = arith.constant 0 : i32
    %2 = arith.cmpi ne, %1, %c0_i32_0 : i32
    scf.if %2 {
      %cst_10 = arith.constant 0.000000e+00 : f32
      %12 = vector.broadcast %cst_10 : f32 to vector<8x128xf32>
      %c0_11 = arith.constant 0 : index
      %c0_12 = arith.constant 0 : index
      %13 = vector.load %arg6[%c0_11, %c0_12] : memref<8x128xf32, #tpu.memory_space<vmem>>, vector<8x128xf32>
      tpu.vector_store %arg6[%c0_11, %c0_12], %12 {strides = array<i32>} : memref<8x128xf32, #tpu.memory_space<vmem>>, vector<8x128xf32>,
    } else {
    }
    %c0 = arith.constant 0 : index
    %c0_1 = arith.constant 0 : index
    %3 = vector.load %arg6[%c0, %c0_1] : memref<8x128xf32, #tpu.memory_space<vmem>>, vector<8x128xf32>
    %c0_2 = arith.constant 0 : index
    %c0_3 = arith.constant 0 : index
    %4 = vector.load %arg3[%c0_2, %c0_3] : memref<8x32xf32, #tpu.memory_space<vmem>>, vector<8x32xf32>
    %c0_4 = arith.constant 0 : index
    %c0_5 = arith.constant 0 : index
    %5 = vector.load %arg4[%c0_4, %c0_5] : memref<32x128xf32, #tpu.memory_space<vmem>>, vector<32x128xf32>
    %cst = arith.constant dense<0.000000e+00> : vector<8x128xf32>
    %6 = tpu.matmul %4, %5, %cst {dimension_numbers = #tpu.dot_dimension_numbers<[1], [0], [0], [1], [0, 0, 1, 1], [], []>} : vector<8x32xf32>, vector<32x128xf32>, vector<8x128xf32> -> vector<8x128xf32>
    %7 = arith.addf %3, %6 : vector<8x128xf32>
    %c0_6 = arith.constant 0 : index
    %c0_7 = arith.constant 0 : index
    %8 = vector.load %arg6[%c0_6, %c0_7] : memref<8x128xf32, #tpu.memory_space<vmem>>, vector<8x128xf32>
    tpu.vector_store %arg6[%c0_6, %c0_7], %7 {strides = array<i32>} : memref<8x128xf32, #tpu.memory_space<vmem>>, vector<8x128xf32>,
    %c0_i32_8 = arith.constant 0 : i32
    %9 = arith.cmpi eq, %arg2, %c0_i32_8 : i32
    %10 = arith.extui %9 : i1 to i32
    %c0_i32_9 = arith.constant 0 : i32
    %11 = arith.cmpi ne, %10, %c0_i32_9 : i32
    scf.if %11 {
      %c0_10 = arith.constant 0 : index
      %c0_11 = arith.constant 0 : index
      %12 = vector.load %arg6[%c0_10, %c0_11] : memref<8x128xf32, #tpu.memory_space<vmem>>, vector<8x128xf32>
      %c0_12 = arith.constant 0 : index
      %c0_13 = arith.constant 0 : index
      %13 = vector.load %arg5[%c0_12, %c0_13] : memref<1x128xf32, #tpu.memory_space<vmem>>, vector<1x128xf32>
      %14 = vector.broadcast %13 : vector<1x128xf32> to vector<8x128xf32>
      %15 = arith.addf %12, %14 : vector<8x128xf32>
      %c0_14 = arith.constant 0 : index
      %c0_15 = arith.constant 0 : index
      %16 = vector.load %arg6[%c0_14, %c0_15] : memref<8x128xf32, #tpu.memory_space<vmem>>, vector<8x128xf32>
      tpu.vector_store %arg6[%c0_14, %c0_15], %15 {strides = array<i32>} : memref<8x128xf32, #tpu.memory_space<vmem>>, vector<8x128xf32>,
    } else {
    }
    return
  }
  func.func @transform_0(%arg0: i32, %arg1: i32, %arg2: i32) -> (i32, i32) {
    %c0_i32 = arith.constant 0 : i32
    return %arg0, %arg2 : i32, i32
  }
  func.func @transform_1(%arg0: i32, %arg1: i32, %arg2: i32) -> (i32, i32) {
    %c0_i32 = arith.constant 0 : i32
    return %arg2, %arg1 : i32, i32
  }
  func.func @transform_2(%arg0: i32, %arg1: i32, %arg2: i32) -> (i32, i32) {
    %c0_i32 = arith.constant 0 : i32
    %c0_i32_0 = arith.constant 0 : i32
    return %c0_i32, %arg1 : i32, i32
  }
  func.func @transform_3(%arg0: i32, %arg1: i32, %arg2: i32) -> (i32, i32) {
    %c0_i32 = arith.constant 0 : i32
    return %arg0, %arg1 : i32, i32
  }
}

</mosaic_0001>

<llo_original>
// kernel: _forward_impl.1
$region0: #{_forward_impl.1}
  #allocation0 [shape = 'u32[]', space=smem, size = 0x4, offset = 0x4, fixed_abs, tag = 'smem constant byte address 0x4 - core index']
  #allocation1 [shape = 'u32[144,128]{1,0:T(1,128)}', space=vmem, size = 0x12000, scoped, tag = 'internal scratch']
  %s0 = inlined_call_operand.hbm [shape: f32[8,32], index: 0, kind: input, shape index: {}]
  %s1 = inlined_call_operand.hbm [shape: f32[32,128], index: 1, kind: input, shape index: {}]
  %s2 = inlined_call_operand.vmem [shape: f32[1,128], index: 2, kind: input, shape index: {}]
  %s3 = inlined_call_operand.hbm [shape: f32[8,128], index: 3, kind: output, shape index: {}]
  %s4 = sld [smem:[#allocation0]]
  $region38: #{_forward_impl.1} parent=0
    _
  %s6 = ssub.s32 1, %s4
  %s7 = scalar_select 0, %s6, %s4
  $region1: #{_forward_impl.1} parent=0
    #allocation2 [shape = 'u8[4096]{0}', space=vmem, size = 0x1000, scoped, tag = 'input window, operand 0, single buffered']
    #allocation3 [shape = 's32[1]{0}', space=sflag, size = 0x4, scoped, tag = 'scoped memory for _forward_impl.1']
    #allocation4 [shape = 's32[1]{0}', space=sflag, size = 0x4, scoped, tag = 'scoped memory for _forward_impl.1']
    #allocation5 [shape = 'u8[16384]{0}', space=vmem, size = 0x4000, scoped, tag = 'input window, operand 1, single buffered']
    #allocation6 [shape = 's32[1]{0}', space=sflag, size = 0x4, scoped, tag = 'scoped memory for _forward_impl.1']
    #allocation7 [shape = 'u8[4096]{0}', space=vmem, size = 0x1000, scoped, tag = 'output window, operand 0, single buffered']
    %8 = vsyncpa [#allocation3], 0
    %9 = vsyncpa [#allocation6], 0
    %10 = vsyncpa [#allocation4], 0
    // Predicated region
    $region2: #{_forward_impl.1} parent=1 // pred_check
      _
    $region3: #{_forward_impl.1} parent=1 // pred_check_branch
      %12 = sbr.rel (0) target = $region5
    $region4: #{_forward_impl.1} parent=1 // pred_region
      %s14 = ssub.s32 128, 128
      %15 = vsyncadd [#allocation3], %s14
      %s17 = sshll.u32 [#allocation2], 4
      %s18 = int_to_ptr.vmem [resolvable:$true] %s17
      %20 = dma.hbm_to_vmem [thread:$0]  %s0, 128, %s18, [#allocation3]
    $region5: #{_forward_impl.1} parent=1 // pred_fallthru
      _
    // Predicated region
    $region6: #{_forward_impl.1} parent=1 // pred_check
      _
    $region7: #{_forward_impl.1} parent=1 // pred_check_branch
      %22 = sbr.rel (0) target = $region9
    $region8: #{_forward_impl.1} parent=1 // pred_region
      %s24 = ssub.s32 512, 512
      %25 = vsyncadd [#allocation6], %s24
      %s26 = sshll.u32 [#allocation5], 4
      %s27 = int_to_ptr.vmem [resolvable:$true] %s26
      %32 = dma.hbm_to_vmem [thread:$0]  %s1, 512, %s27, [#allocation6], 128, 128, 8
    $region9: #{_forward_impl.1} parent=1 // pred_fallthru
      _
    // Predicated region
    $region10: #{_forward_impl.1} parent=1 // pred_check
      _
    $region11: #{_forward_impl.1} parent=1 // pred_check_branch
      %34 = sbr.rel (0) target = $region13
    $region12: #{_forward_impl.1} parent=1 // pred_region
      _
    $region13: #{_forward_impl.1} parent=1 // pred_fallthru
      _
    // Predicated region
    $region14: #{_forward_impl.1} parent=1 // pred_check
      _
    $region15: #{_forward_impl.1} parent=1 // pred_check_branch
      %36 = sbr.rel (0) target = $region17
    $region16: #{_forward_impl.1} parent=1 // pred_region
      %37 = dma.done [#allocation3], 128
    $region17: #{_forward_impl.1} parent=1 // pred_fallthru
      _
    // Predicated region
    $region18: #{_forward_impl.1} parent=1 // pred_check
      _
    $region19: #{_forward_impl.1} parent=1 // pred_check_branch
      %39 = sbr.rel (0) target = $region21
    $region20: #{_forward_impl.1} parent=1 // pred_region
      %40 = dma.done [#allocation6], 512
    $region21: #{_forward_impl.1} parent=1 // pred_fallthru
      _
    %p41 = scmp.eq.s32.totalorder 0, 0
    // Predicated region
    $region22: #{_forward_impl.1} parent=1 // pred_check
      %p42 = pneg %p41
    $region23: #{_forward_impl.1} parent=1 // pred_check_branch
      %44 = sbr.rel (%p42) target = $region25
    $region24: #{_forward_impl.1} parent=1 // pred_region
      %45 = vst [vmem:[#allocation7] sm:$0xff] 0.0
    $region25: #{_forward_impl.1} parent=1 // pred_fallthru
      _
    %v46 = vld [vmem:[#allocation7] sm:$0xff]
    %v47 = vld [vmem:[#allocation2] sm:$0xff]
    %v48 = vld [vmem:[#allocation5] sm:$0xff]
    %v49 = vld [vmem:[#allocation5 + $0x8] sm:$0xff]
    %v50 = vld [vmem:[#allocation5 + $0x10] sm:$0xff]
    %v51 = vld [vmem:[#allocation5 + $0x18] sm:$0xff]
    %vm52 = vcmask 261120
    %v54 = vsel %vm52, %v47, 0
    %56 = vmatprep.subr.mxu0 0.0
    %57 = vmatpush1.msra.mxu0 %v48
    %58 = vmatprep.subr.mxu0 0.0
    %59 = vmatpush1.msra.mxu0 %v49
    %60 = vmatprep.subr.mxu0 0.0
    %61 = vmatpush1.msra.mxu0 %v50
    %62 = vmatprep.subr.mxu0 0.0
    %63 = vmatpush1.msra.mxu0 %v51
    %64 = vmatprep.subr.mxu0 0.0
    %65 = vmatpush1.msra.mxu0 0.0
    %66 = vmatprep.subr.mxu0 0.0
    %67 = vmatpush1.msra.mxu0 0.0
    %68 = vmatprep.subr.mxu0 0.0
    %69 = vmatpush1.msra.mxu0 0.0
    %70 = vmatprep.subr.mxu0 0.0
    %71 = vmatpush1.msra.mxu0 0.0
    %72 = vmatprep.subr.mxu0 0.0
    %73 = vmatpush1.msra.mxu0 0.0
    %74 = vmatprep.subr.mxu0 0.0
    %75 = vmatpush1.msra.mxu0 0.0
    %76 = vmatprep.subr.mxu0 0.0
    %77 = vmatpush1.msra.mxu0 0.0
    %78 = vmatprep.subr.mxu0 0.0
    %79 = vmatpush1.msra.mxu0 0.0
    %80 = vmatprep.subr.mxu0 0.0
    %81 = vmatpush1.msra.mxu0 0.0
    %82 = vmatprep.subr.mxu0 0.0
    %83 = vmatpush1.msra.mxu0 0.0
    %84 = vmatprep.subr.mxu0 0.0
    %85 = vmatpush1.msra.mxu0 0.0
    %86 = vmatprep.subr.mxu0 0.0
    %87 = vmatpush1.msra.mxu0 0.0
    %88 = vmatprep.subr.mxu0 0.0
    %89 = vmatpush1.msra.mxu0 0.0
    %90 = vmatprep.subr.mxu0 0.0
    %91 = vmatpush1.msra.mxu0 0.0
    %92 = vmatprep.subr.mxu0 0.0
    %93 = vmatpush1.msra.mxu0 0.0
    %94 = vmatprep.subr.mxu0 0.0
    %95 = vmatpush1.msra.mxu0 0.0
    %96 = vmatprep.subr.mxu0 0.0
    %97 = vmatpush1.msra.mxu0 0.0
    %98 = vmatprep.subr.mxu0 0.0
    %99 = vmatpush1.msra.mxu0 0.0
    %100 = vmatprep.subr.mxu0 0.0
    %101 = vmatpush1.msra.mxu0 0.0
    %102 = vmatprep.subr.mxu0 0.0
    %103 = vmatpush1.msra.mxu0 0.0
    %104 = vmatprep.subr.mxu0 0.0
    %105 = vmatpush1.msra.mxu0 0.0
    %106 = vmatprep.subr.mxu0 0.0
    %107 = vmatpush1.msra.mxu0 0.0
    %108 = vmatprep.subr.mxu0 0.0
    %109 = vmatpush1.msra.mxu0 0.0
    %110 = vmatprep.subr.mxu0 0.0
    %111 = vmatpush1.msra.mxu0 0.0
    %112 = vmatprep.subr.mxu0 0.0
    %113 = vmatpush1.msra.mxu0 0.0
    %114 = vmatprep.subr.mxu0 0.0
    %115 = vmatpush1.msra.mxu0 0.0
    %116 = vmatprep.subr.mxu0 0.0
    %117 = vmatpush1.msra.mxu0 0.0
    %118 = vmatprep.subr.mxu0 0.0
    %119 = vmatpush1.msra.mxu0 0.0
    %120 = vmatprep.mubr.f32.mxu0 0.0
    %121 = vmatmul.mubr.f32.gmra.mrb[0].mxu0 %v54
    %v122 = vpop.f32.mrb[0].mxu0
    %v123 = vadd.f32 0.0, %v122
    %v124 = vpop.f32.mrb[0].mxu0
    %125 = vdwg.mxu0
    %v126 = vadd.f32 %v46, %v123
    %127 = vst [vmem:[#allocation7] sm:$0xff] %v126
    // Predicated region
    $region26: #{_forward_impl.1} parent=1 // pred_check
      %p128 = pneg %p41
    $region27: #{_forward_impl.1} parent=1 // pred_check_branch
      %130 = sbr.rel (%p128) target = $region29
    $region28: #{_forward_impl.1} parent=1 // pred_region
      %v131 = vld [vmem:[#allocation7] sm:$0xff]
      %v132 = vld [vmem:[%s2] sm:$0x1]
      %v134 = vlaneseq
      %v135 = vshrl.u32 %v134, 7
      %v136 = vsub.s32 0, %v135
      %v137 = vrot.slane %v132, %v136
      %v139 = vadd.f32 %v131, %v137
      %140 = vst [vmem:[#allocation7] sm:$0xff] %v139
    $region29: #{_forward_impl.1} parent=1 // pred_fallthru
      _
    // Predicated region
    $region30: #{_forward_impl.1} parent=1 // pred_check
      _
    $region31: #{_forward_impl.1} parent=1 // pred_check_branch
      %142 = sbr.rel (0) target = $region33
    $region32: #{_forward_impl.1} parent=1 // pred_region
      %s144 = ssub.s32 128, 128
      %145 = vsyncadd [#allocation4], %s144
      %s147 = sshll.u32 [#allocation7], 4
      %s148 = int_to_ptr.vmem [resolvable:$true] %s147
      %150 = dma.vmem_to_hbm [thread:$0]  %s148, 128, %s3, [#allocation4]
    $region33: #{_forward_impl.1} parent=1 // pred_fallthru
      _
    // Predicated region
    $region34: #{_forward_impl.1} parent=1 // pred_check
      _
    $region35: #{_forward_impl.1} parent=1 // pred_check_branch
      %152 = sbr.rel (0) target = $region37
    $region36: #{_forward_impl.1} parent=1 // pred_region
      %153 = dma.done [#allocation4], 128
    $region37: #{_forward_impl.1} parent=1 // pred_fallthru
      _
    %154 = vsyncpa [#allocation3], 1
    %155 = vsyncpa [#allocation6], 1
    %156 = vsyncpa [#allocation4], 1

</llo_original>
